<compile_context>
chip_gen: v6e
topology: v6e:2x2x1
jax: 0.10.0
libtpu: 0.0.40
codegen_flags: <defaults>
</compile_context>

<pallas_src>
import functools

import jax
import jax.numpy as jnp
from jax.experimental import pallas as pl
from jax.experimental.pallas import tpu as pltpu


def _round_up(x, m):
    return ((x + m - 1) // m) * m


def _tpu_vmem_capacity_bytes():
    """Physical VMEM per TensorCore (128 MiB v5e/v6e, 64 MiB v7x)."""
    try:
        return int(pltpu.get_tpu_info().vmem_capacity_bytes)
    except Exception:
        return 64 * 1024 * 1024  # conservative (v7x-sized) fallback


def _choose_tile_n(n, c, in_itemsize, vmem_budget):
    """Pick the batch-tile height so ~vmem_budget bytes of live data fit.

    Per-row live bytes (lane dim is padded to 128 in VMEM):
      * logits block, double-buffered             : 2 * c_pad * itemsize
      * target + alpha column blocks, 2 buffers   : 2 * 2 * 128 * 4
      * f32 (tile, C) temporaries inside kernel   : ~5 * c_pad * 4
      * f32 (tile, 1) column temporaries          : ~6 * 128 * 4
    """
    c_pad = _round_up(max(c, 1), 128)
    per_row = (2 * c_pad * in_itemsize
               + 2 * 2 * 128 * 4
               + 5 * c_pad * 4
               + 6 * 128 * 4)
    tile = int(vmem_budget // per_row)
    tile = max(8, min(tile, 8192))
    if n <= tile:
        # single tile covering every row (block may overhang; rows are masked)
        return _round_up(max(n, 1), 8)
    if tile >= 128:
        # keep the tile 128-aligned so the lane-dense reduce=False output block
        # satisfies the (8, 128) block constraint
        return (tile // 128) * 128
    return (tile // 8) * 8


def _focal_loss_kernel(x_ref, t_ref, a_ref, o_ref, *, gamma, rem, reduce_, lane_dense):
    x = x_ref[...].astype(jnp.float32)        # (tile_n, C) logits (native -> f32)
    t = t_ref[...]                            # (tile_n, 1) int32 target ids
    a_t = a_ref[...]                          # (tile_n, 1) f32 alpha[target] (pre-gathered)
    tn, c = x.shape

    # one-hot of the target class: (1, C) lane iota broadcast against targets
    cls = jax.lax.broadcasted_iota(jnp.int32, (1, c), 1)
    onehot = (cls == t).astype(jnp.float32)   # (tile_n, C)

    # log softmax at the target class via logsumexp (stable, no log(0))
    m = jnp.max(x, axis=1, keepdims=True)                                  # (tile_n, 1)
    lse = m + jnp.log(jnp.sum(jnp.exp(x - m), axis=1, keepdims=True))      # (tile_n, 1)
    x_t = jnp.sum(x * onehot, axis=1, keepdims=True)                       # target logit
    log_p = x_t - lse                                                      # log softmax[target]
    probs = jnp.exp(log_p)                                                 # softmax[target]

    # (1 - p)^gamma: integer gamma -> plain multiplies (VPU), else pow (EUP)
    w = jnp.maximum(1.0 - probs, 0.0)
    g = float(gamma)
    if g == int(g) and 0.0 <= g <= 8.0:
        gi = int(g)
        focal = jnp.ones_like(w) if gi == 0 else w
        for _ in range(max(gi - 1, 0)):
            focal = focal * w
    else:
        focal = jnp.power(w, g)

    loss = -a_t * focal * log_p               # (tile_n, 1)

    def emit(vals):
        if reduce_:
            s = jnp.sum(vals, axis=0, keepdims=True)          # (1, 1) partial sum
            o_ref[...] = jnp.broadcast_to(s, (1, 128))        # lane-dense store
        elif lane_dense:
            # sublane->lane relayout so the per-row output store is unmasked
            o_ref[...] = vals.reshape(1, tn)
        else:
            o_ref[...] = vals                                 # (tile_n, 1) column fallback

    if rem == 0:
        emit(loss)
    else:
        last = pl.num_programs(0) - 1

        # only the partial last tile pays for the out-of-range row mask
        @pl.when(pl.program_id(0) == last)
        def _():
            row = jax.lax.broadcasted_iota(jnp.int32, (tn, 1), 0)
            emit(jnp.where(row < rem, loss, 0.0))

        @pl.when(pl.program_id(0) != last)
        def _():
            emit(loss)


def focal_loss(inputs, targets, alpha, gamma=2.0, size_average=True, reduce=True,
               tile_n=None):
    """Pallas-backed equivalent of FocalLoss.forward (softmax branch)."""
    N, C = inputs.shape
    t = targets.reshape(N, 1).astype(jnp.int32)
    # gather alpha per row in the wrapper (4 bytes/row) instead of an
    # in-kernel (tile_n, C) multiply + cross-lane reduction
    alpha_vec = jnp.asarray(alpha, dtype=jnp.float32).reshape(-1)
    a_rows = alpha_vec[t[:, 0]].reshape(N, 1)

    vmem_phys = _tpu_vmem_capacity_bytes()
    vmem_budget = (vmem_phys * 3) // 8          # ~48 MiB v5e/v6e, ~24 MiB v7x
    if tile_n is None:
        tile_n = _choose_tile_n(N, C, inputs.dtype.itemsize, vmem_budget)
    else:
        tile_n = max(8, (int(tile_n) // 8) * 8)
    num_tiles = pl.cdiv(N, tile_n)
    lane_dense = (not reduce) and (num_tiles == 1 or tile_n % 128 == 0)

    in_specs = [
        pl.BlockSpec((tile_n, C), lambda i: (i, 0)),   # logits, native dtype
        pl.BlockSpec((tile_n, 1), lambda i: (i, 0)),   # target ids
        pl.BlockSpec((tile_n, 1), lambda i: (i, 0)),   # alpha[target]
    ]
    if reduce:
        out_shape = jax.ShapeDtypeStruct((1, num_tiles * 128), jnp.float32)
        out_specs = pl.BlockSpec((1, 128), lambda i: (0, i))
        out_bytes = num_tiles * 128 * 4
    elif lane_dense:
        out_shape = jax.ShapeDtypeStruct((1, num_tiles * tile_n), jnp.float32)
        out_specs = pl.BlockSpec((1, tile_n), lambda i: (0, i))
        out_bytes = num_tiles * tile_n * 4
    else:
        out_shape = jax.ShapeDtypeStruct((N, 1), jnp.float32)
        out_specs = pl.BlockSpec((tile_n, 1), lambda i: (i, 0))
        out_bytes = N * 4

    kernel = functools.partial(
        _focal_loss_kernel,
        gamma=float(gamma),
        rem=int(N % tile_n),
        reduce_=bool(reduce),
        lane_dense=bool(lane_dense),
    )

    in_bytes = N * C * inputs.dtype.itemsize + 2 * N * 4
    cost = pl.CostEstimate(
        flops=7 * N * C + 12 * N,
        transcendentals=N * C + 2 * N,
        bytes_accessed=in_bytes + out_bytes,
    )

    out = pl.pallas_call(
        kernel,
        out_shape=out_shape,
        grid=(num_tiles,),
        in_specs=in_specs,
        out_specs=out_specs,
        compiler_params=pltpu.CompilerParams(
            dimension_semantics=("parallel",),
            vmem_limit_bytes=int((vmem_phys * 5) // 8),
        ),
        cost_estimate=cost,
    )(inputs, t, a_rows)

    if not reduce:
        if lane_dense:
            return out.reshape(-1)[:N].reshape(N, 1)
        return out
    partial = out.reshape(num_tiles, 128)[:, 0]   # one partial sum per tile
    total = jnp.sum(partial)                      # padded rows contributed zeros
    return total / N if size_average else total


# TODO(synk): the `sigmoid=True` branch of the PyTorch module compares the whole
# `targets` tensor against Python ints (`if targets == 0:`), which is only
# well-defined for scalar targets; only the default softmax branch is implemented.


def _focal_loss_ref_rows(inputs, targets, alpha, gamma):
    """Pure-JAX reference of the PyTorch softmax branch (per-row losses)."""
    p = jax.nn.softmax(inputs.astype(jnp.float32), axis=1)
    probs = jnp.take_along_axis(p, targets[:, None], axis=1)               # (N, 1)
    a = jnp.asarray(alpha, jnp.float32).reshape(-1)[targets][:, None]      # (N, 1)
    return -a * jnp.power(1.0 - probs, gamma) * jnp.log(probs)             # (N, 1)


if __name__ == "__main__":
    keys = jax.random.split(jax.random.PRNGKey(0), 8)

    # Case 1: small single-tile batch, module defaults (alpha=None -> ones, gamma=2).
    N1, C1 = 8, 16
    x1 = jax.random.normal(keys[0], (N1, C1), dtype=jnp.float32)
    t1 = jax.random.randint(keys[1], (N1,), 0, C1, dtype=jnp.int32)
    a1 = jnp.ones((C1, 1), dtype=jnp.float32)
    loss1 = jax.block_until_ready(focal_loss(x1, t1, a1, gamma=2.0))
    ref1 = _focal_loss_ref_rows(x1, t1, a1, 2.0).mean()
    assert jnp.allclose(loss1, ref1, rtol=1e-4, atol=1e-4), (loss1, ref1)

    # Case 2: multi-tile grid with a partial last tile, non-uniform alpha,
    #         mean / sum reductions and the lane-dense reduce=False path.
    N2, C2 = 300, 16
    x2 = jax.random.normal(keys[2], (N2, C2), dtype=jnp.float32)
    t2 = jax.random.randint(keys[3], (N2,), 0, C2, dtype=jnp.int32)
    a2 = jax.random.uniform(keys[4], (C2, 1), dtype=jnp.float32, minval=0.25, maxval=1.0)
    mean2 = focal_loss(x2, t2, a2, gamma=2.0, tile_n=128)
    sum2 = focal_loss(x2, t2, a2, gamma=2.0, size_average=False, tile_n=128)
    rows2 = focal_loss(x2, t2, a2, gamma=2.0, reduce=False, tile_n=128)
    jax.block_until_ready((mean2, sum2, rows2))
    ref_rows2 = _focal_loss_ref_rows(x2, t2, a2, 2.0)
    assert rows2.shape == (N2, 1)
    assert jnp.allclose(mean2, ref_rows2.mean(), rtol=1e-4, atol=1e-4), (mean2, ref_rows2.mean())
    assert jnp.allclose(sum2, ref_rows2.sum(), rtol=1e-4, atol=1e-4), (sum2, ref_rows2.sum())
    assert jnp.allclose(rows2, ref_rows2, rtol=1e-4, atol=1e-4)

    # Case 3: block taller than the array (N < 8) + integer gamma=3, reduce=False.
    N3, C3 = 4, 8
    x3 = jax.random.normal(keys[5], (N3, C3), dtype=jnp.float32)
    t3 = jax.random.randint(keys[6], (N3,), 0, C3, dtype=jnp.int32)
    a3 = jnp.ones((C3, 1), dtype=jnp.float32)
    rows3 = jax.block_until_ready(focal_loss(x3, t3, a3, gamma=3.0, reduce=False))
    ref_rows3 = _focal_loss_ref_rows(x3, t3, a3, 3.0)
    assert jnp.allclose(rows3, ref_rows3, rtol=1e-4, atol=1e-4)

    print("KERNEL_OK")
</pallas_src>

<mosaic_0001>
module attributes {stable_mosaic.version = 11 : i64} {
  func.func @_focal_loss_kernel(%arg0: i32, %arg1: memref<8x16xf32, #tpu.memory_space<vmem>>, %arg2: memref<8x1xi32, #tpu.memory_space<vmem>>, %arg3: memref<8x1xf32, #tpu.memory_space<vmem>>, %arg4: memref<1x128xf32, #tpu.memory_space<vmem>>) attributes {dimension_semantics = [#tpu.dimension_semantics<parallel>], iteration_bounds = array<i64: 1>, scalar_prefetch = 0 : i64, scratch_operands = 0 : i64, tpu.core_type = #tpu.core_type<tc>, window_params = [{transform_indices = @transform_0, window_bounds = array<i64: 8, 16>}, {transform_indices = @transform_1, window_bounds = array<i64: 8, 1>}, {transform_indices = @transform_2, window_bounds = array<i64: 8, 1>}, {transform_indices = @transform_3, window_bounds = array<i64: 1, 128>}]} {
    %c0 = arith.constant 0 : index
    %c0_0 = arith.constant 0 : index
    %0 = vector.load %arg1[%c0, %c0_0] : memref<8x16xf32, #tpu.memory_space<vmem>>, vector<8x16xf32>
    %c0_1 = arith.constant 0 : index
    %c0_2 = arith.constant 0 : index
    %1 = vector.load %arg2[%c0_1, %c0_2] : memref<8x1xi32, #tpu.memory_space<vmem>>, vector<8x1xi32>
    %c0_3 = arith.constant 0 : index
    %c0_4 = arith.constant 0 : index
    %2 = vector.load %arg3[%c0_3, %c0_4] : memref<8x1xf32, #tpu.memory_space<vmem>>, vector<8x1xf32>
    %3 = tpu.iota {dimensions = array<i32: 1>} : vector<1x16xi32>
    %4 = vector.broadcast %3 : vector<1x16xi32> to vector<8x16xi32>
    %5 = vector.broadcast %1 : vector<8x1xi32> to vector<8x16xi32>
    %6 = arith.cmpi eq, %4, %5 : vector<8x16xi32>
    %7 = arith.extui %6 : vector<8x16xi1> to vector<8x16xi32>
    %8 = arith.sitofp %7 : vector<8x16xi32> to vector<8x16xf32>
    %cst = arith.constant dense<0xFF800000> : vector<8xf32>
    %9 = vector.multi_reduction <maximumf>, %0, %cst [1] : vector<8x16xf32> to vector<8xf32>
    %10 = vector.shape_cast %9 : vector<8xf32> to vector<8x1xf32>
    %11 = vector.broadcast %10 : vector<8x1xf32> to vector<8x16xf32>
    %12 = arith.subf %0, %11 : vector<8x16xf32>
    %13 = math.exp %12 : vector<8x16xf32>
    %cst_5 = arith.constant dense<0.000000e+00> : vector<8xf32>
    %14 = vector.multi_reduction <add>, %13, %cst_5 [1] : vector<8x16xf32> to vector<8xf32>
    %15 = vector.shape_cast %14 : vector<8xf32> to vector<8x1xf32>
    %16 = math.log %15 : vector<8x1xf32>
    %17 = arith.addf %10, %16 : vector<8x1xf32>
    %18 = arith.mulf %0, %8 : vector<8x16xf32>
    %cst_6 = arith.constant dense<0.000000e+00> : vector<8xf32>
    %19 = vector.multi_reduction <add>, %18, %cst_6 [1] : vector<8x16xf32> to vector<8xf32>
    %20 = vector.shape_cast %19 : vector<8xf32> to vector<8x1xf32>
    %21 = arith.subf %20, %17 : vector<8x1xf32>
    %22 = math.exp %21 : vector<8x1xf32>
    %cst_7 = arith.constant 1.000000e+00 : f32
    %23 = vector.broadcast %cst_7 : f32 to vector<8x1xf32>
    %24 = arith.subf %23, %22 : vector<8x1xf32>
    %cst_8 = arith.constant 0.000000e+00 : f32
    %25 = vector.broadcast %cst_8 : f32 to vector<8x1xf32>
    %26 = arith.maximumf %24, %25 : vector<8x1xf32>
    %27 = arith.mulf %26, %26 : vector<8x1xf32>
    %cst_9 = arith.constant 0.000000e+00 : f32
    %28 = vector.broadcast %cst_9 : f32 to vector<8x1xf32>
    %29 = arith.subf %28, %2 : vector<8x1xf32>
    %30 = arith.mulf %29, %27 : vector<8x1xf32>
    %31 = arith.mulf %30, %21 : vector<8x1xf32>
    %cst_10 = arith.constant dense<0.000000e+00> : vector<1xf32>
    %32 = vector.multi_reduction <add>, %31, %cst_10 [0] : vector<8x1xf32> to vector<1xf32>
    %33 = vector.shape_cast %32 : vector<1xf32> to vector<1x1xf32>
    %34 = vector.shape_cast %33 : vector<1x1xf32> to vector<1x1xf32>
    %35 = vector.broadcast %34 : vector<1x1xf32> to vector<1x128xf32>
    %c0_11 = arith.constant 0 : index
    %c0_12 = arith.constant 0 : index
    %36 = vector.load %arg4[%c0_11, %c0_12] : memref<1x128xf32, #tpu.memory_space<vmem>>, vector<1x128xf32>
    tpu.vector_store %arg4[%c0_11, %c0_12], %35 {strides = array<i32>} : memref<1x128xf32, #tpu.memory_space<vmem>>, vector<1x128xf32>,
    return
  }
  func.func @transform_0(%arg0: i32) -> (i32, i32) {
    %c0_i32 = arith.constant 0 : i32
    %c0_i32_0 = arith.constant 0 : i32
    return %arg0, %c0_i32 : i32, i32
  }
  func.func @transform_1(%arg0: i32) -> (i32, i32) {
    %c0_i32 = arith.constant 0 : i32
    %c0_i32_0 = arith.constant 0 : i32
    return %arg0, %c0_i32 : i32, i32
  }
  func.func @transform_2(%arg0: i32) -> (i32, i32) {
    %c0_i32 = arith.constant 0 : i32
    %c0_i32_0 = arith.constant 0 : i32
    return %arg0, %c0_i32 : i32, i32
  }
  func.func @transform_3(%arg0: i32) -> (i32, i32) {
    %c0_i32 = arith.constant 0 : i32
    %c0_i32_0 = arith.constant 0 : i32
    return %c0_i32, %arg0 : i32, i32
  }
}

</mosaic_0001>

<llo_original>
// kernel: tpu_custom_call.1
$region0: #{tpu_custom_call.1}
  #allocation0 [shape = 'u32[]', space=smem, size = 0x4, offset = 0x4, fixed_abs, tag = 'smem constant byte address 0x4 - core index']
  #allocation1 [shape = 'u32[144,128]{1,0:T(1,128)}', space=vmem, size = 0x12000, scoped, tag = 'internal scratch']
  %s0 = inlined_call_operand.vmem [shape: f32[8,16], index: 0, kind: input, shape index: {}]
  %s1 = inlined_call_operand.vmem [shape: s32[8,1], index: 1, kind: input, shape index: {}]
  %s2 = inlined_call_operand.vmem [shape: f32[8,1], index: 2, kind: input, shape index: {}]
  %s3 = inlined_call_operand.hbm [shape: f32[1,128], index: 3, kind: output, shape index: {}]
  %s4 = sld [smem:[#allocation0]]
  $region22: #{tpu_custom_call.1} parent=0
    _
  %s6 = ssub.s32 1, %s4
  %s7 = scalar_select 0, %s6, %s4
  $region1: #{tpu_custom_call.1} parent=0
    #allocation2 [shape = 'u8[512]{0}', space=vmem, size = 0x400, scoped, tag = 'output window, operand 0, single buffered']
    #allocation3 [shape = 's32[1]{0}', space=sflag, size = 0x4, scoped, tag = 'scoped memory for tpu_custom_call.1']
    %8 = vsyncpa [#allocation3], 0
    // Predicated region
    $region2: #{tpu_custom_call.1} parent=1 // pred_check
      _
    $region3: #{tpu_custom_call.1} parent=1 // pred_check_branch
      %10 = sbr.rel (0) target = $region5
    $region4: #{tpu_custom_call.1} parent=1 // pred_region
      _
    $region5: #{tpu_custom_call.1} parent=1 // pred_fallthru
      _
    // Predicated region
    $region6: #{tpu_custom_call.1} parent=1 // pred_check
      _
    $region7: #{tpu_custom_call.1} parent=1 // pred_check_branch
      %12 = sbr.rel (0) target = $region9
    $region8: #{tpu_custom_call.1} parent=1 // pred_region
      _
    $region9: #{tpu_custom_call.1} parent=1 // pred_fallthru
      _
    // Predicated region
    $region10: #{tpu_custom_call.1} parent=1 // pred_check
      _
    $region11: #{tpu_custom_call.1} parent=1 // pred_check_branch
      %14 = sbr.rel (0) target = $region13
    $region12: #{tpu_custom_call.1} parent=1 // pred_region
      _
    $region13: #{tpu_custom_call.1} parent=1 // pred_fallthru
      _
    %v15 = vld [vmem:[%s0] sm:$0xff]
    %v16 = vld [vmem:[%s1] sm:$0xff]
    %v17 = vld [vmem:[%s2] sm:$0xff]
    %v18 = vlaneseq
    %v19 = vand.u32 %v18, 127
    %20 = vset.pattern.permute.xlu0 0
    %21 = vperm.xlu0 %20, %v16
    %v22 = vpop.permute.xlu0 %21
    %vm23 = vcmp.eq.s32.totalorder %v19, %v22
    %v24 = vsel %vm23, 1, 0
    %v25 = vcvt.s32.f32 %v24
    %vm26 = vcmask 130048
    %v27 = vsel %vm26, %v15, -inf
    %28 = vmax.xlane.f32.xlu0 %v27
    %v29 = vpop.xlane.xlu0 %28
    %v30 = vsub.f32 %v15, %v29
    %v31 = vmul.f32 %v30, 1.442695
    %v32 = vpow.pop %v31
    %v33 = vsel %vm26, %v32, 0.0
    %34 = vadd.xlane.f32.xlu0 %v33
    %v35 = vpop.xlane.xlu0 %34
    %v36 = vlog2.pop %v35
    %v37 = vmul.f32 %v36, 0.6931472
    %v38 = vadd.f32 %v29, %v37
    %v39 = vmul.f32 %v15, %v25
    %v40 = vsel %vm26, %v39, 0.0
    %41 = vadd.xlane.f32.xlu0 %v40
    %v42 = vpop.xlane.xlu0 %41
    %v43 = vsub.f32 %v42, %v38
    %v44 = vmul.f32 %v43, 1.442695
    %v45 = vpow.pop %v44
    %v46 = vsub.f32 1.0, %v45
    %v47 = vmax.f32 %v46, 0.0
    %v48 = vmul.f32 %v47, %v47
    %v49 = vsub.f32 0.0, %v17
    %v50 = vmul.f32 %v49, %v48
    %v51 = vmul.f32 %v50, %v43
    %vm52 = vcmask 7168
    %v53 = vsel %vm52, %v51, 0.0
    %v54 = vrot.slane %v53, 4
    %v55 = vadd.f32 %v53, %v54
    %v56 = vrot.slane %v55, 2
    %v57 = vadd.f32 %v55, %v56
    %v58 = vrot.slane %v57, 1
    %v59 = vadd.f32 %v57, %v58
    %61 = vset.pattern.permute.xlu0 0
    %62 = vperm.xlu0 %61, %v59
    %v63 = vpop.permute.xlu0 %62
    %65 = vst [vmem:[#allocation2] sm:$0x1] %v63
    // Predicated region
    $region14: #{tpu_custom_call.1} parent=1 // pred_check
      _
    $region15: #{tpu_custom_call.1} parent=1 // pred_check_branch
      %67 = sbr.rel (0) target = $region17
    $region16: #{tpu_custom_call.1} parent=1 // pred_region
      %s69 = ssub.s32 16, 16
      %70 = vsyncadd [#allocation3], %s69
      %s72 = sshll.u32 [#allocation2], 4
      %s73 = int_to_ptr.vmem [resolvable:$true] %s72
      %75 = dma.vmem_to_hbm [thread:$0]  %s73, 16, %s3, [#allocation3]
    $region17: #{tpu_custom_call.1} parent=1 // pred_fallthru
      _
    // Predicated region
    $region18: #{tpu_custom_call.1} parent=1 // pred_check
      _
    $region19: #{tpu_custom_call.1} parent=1 // pred_check_branch
      %77 = sbr.rel (0) target = $region21
    $region20: #{tpu_custom_call.1} parent=1 // pred_region
      %78 = dma.done [#allocation3], 16
    $region21: #{tpu_custom_call.1} parent=1 // pred_fallthru
      _
    %79 = vsyncpa [#allocation3], 1

</llo_original>
